<compile_context>
chip_gen: v7x
topology: tpu7x:2x2x1
jax: 0.10.0
libtpu: 0.0.40
codegen_flags: <defaults>
</compile_context>

<pallas_src>
import functools

import jax
import jax.numpy as jnp
from jax.experimental import pallas as pl
from jax.experimental.pallas import tpu as pltpu


def _round_up(x, m):
    return ((x + m - 1) // m) * m


def _conv_relu_kernel(p_ref, w_ref, b_ref, o_ref):
    # p_ref: (TM, Kp) bf16 patches, w_ref: (Kp, Np) bf16, b_ref: (1, Np) f32.
    acc = jnp.dot(p_ref[...], w_ref[...], preferred_element_type=jnp.float32)
    acc = acc + b_ref[...]  # broadcast over rows
    # leaky_relu with negative_slope = 0.2
    o_ref[...] = jnp.where(acc > 0, acc, 0.2 * acc).astype(o_ref.dtype)


def _im2col_nhwc(x_nchw, kernel_size, stride, padding):
    """Extract conv patches in (c, kh, kw)-minor order, no big patch transpose.

    Returns (N*OH*OW, C*KH*KW) plus (OH, OW).
    """
    N, C, H, W = x_nchw.shape
    KH, KW = kernel_size
    # Small NCHW->NHWC transpose of the input (1x input bytes) instead of
    # transposing the KH*KW-times-larger patch tensor.
    x_nhwc = jnp.transpose(x_nchw, (0, 2, 3, 1))
    xp = jnp.pad(x_nhwc, ((0, 0), (padding, padding), (padding, padding), (0, 0)))
    OH = (H + 2 * padding - KH) // stride + 1
    OW = (W + 2 * padding - KW) // stride + 1
    cols = []
    for kh in range(KH):
        for kw in range(KW):
            cols.append(
                xp[:, kh : kh + (OH - 1) * stride + 1 : stride,
                       kw : kw + (OW - 1) * stride + 1 : stride, :]
            )  # (N, OH, OW, C)
    # stack -> (N, OH, OW, C, KH*KW); contiguous reshape -> (M, C*KH*KW).
    # K is ordered (c, kh, kw), matching weight_oihw.reshape(C_out, C_in*KH*KW).
    patches = jnp.stack(cols, axis=-1).reshape(N * OH * OW, C * KH * KW)
    return patches, OH, OW


@functools.partial(jax.jit, static_argnames=("stride", "padding", "tile_m"))
def conv2d_relu(x_nchw, weight_oihw, bias, *, stride=1, padding=1, tile_m=None):
    N, C_in, H, W = x_nchw.shape
    C_out, _, KH, KW = weight_oihw.shape

    patches, OH, OW = _im2col_nhwc(x_nchw, (KH, KW), stride, padding)
    # TODO(synk): at realistic C_in/H/W, move patch extraction into the kernel
    # (accumulate KH*KW shifted matmuls on an NHWC input tile) to avoid the
    # KH*KW-times HBM read amplification of the materialized patch matrix.
    M, K = patches.shape

    # Lane-dense padding: K and C_out up to multiples of 128. Zero columns are
    # free on the MXU (same number of vmatmul pushes) and turn masked partial
    # loads/stores into full-width ones.
    Kp = _round_up(K, 128)
    Np = _round_up(C_out, 128)

    # M tiling: largest sublane-aligned tile that still leaves >=2 grid steps
    # (marked "parallel") so both v7x TensorCores take work; capped so the
    # double-buffered patch tile stays comfortably inside VMEM.
    if tile_m is None:
        tile_m = min(1024, max(8, _round_up((M + 1) // 2, 8)))
    Mp = _round_up(M, tile_m)
    grid_m = Mp // tile_m

    # bf16 operands into the MXU (halves HBM traffic, doubles MXU throughput);
    # accumulation stays in f32 inside the kernel.
    patches = jnp.pad(patches, ((0, Mp - M), (0, Kp - K))).astype(jnp.bfloat16)

    # Weight as (K, C_out) in the same (c, kh, kw) order, zero-padded.
    w_mat = weight_oihw.reshape(C_out, C_in * KH * KW).T
    w_mat = jnp.pad(w_mat, ((0, Kp - K), (0, Np - C_out))).astype(jnp.bfloat16)
    b_mat = jnp.pad(bias.reshape(1, C_out), ((0, 0), (0, Np - C_out))).astype(jnp.float32)

    cost = pl.CostEstimate(
        flops=2 * Mp * Kp * Np,
        transcendentals=0,
        bytes_accessed=Mp * Kp * 2 + Kp * Np * 2 + Np * 4 + Mp * Np * 4,
    )

    # TODO(synk): at real conv sizes (C_out >= 128, large K) add a second grid
    # axis over C_out tiles, single-buffer the grid-invariant weight block
    # (pipeline_mode=pl.Buffered(1)), and size tiles against v7x's 64 MiB VMEM
    # via pltpu.CompilerParams(vmem_limit_bytes=...).
    out_flat = pl.pallas_call(
        _conv_relu_kernel,
        out_shape=jax.ShapeDtypeStruct((Mp, Np), jnp.float32),
        grid_spec=pltpu.PrefetchScalarGridSpec(
            num_scalar_prefetch=0,
            grid=(grid_m,),
            in_specs=[
                pl.BlockSpec((tile_m, Kp), lambda i: (i, 0)),
                pl.BlockSpec((Kp, Np), lambda i: (0, 0)),
                pl.BlockSpec((1, Np), lambda i: (0, 0)),
            ],
            out_specs=pl.BlockSpec((tile_m, Np), lambda i: (i, 0)),
        ),
        compiler_params=pltpu.CompilerParams(
            dimension_semantics=("parallel",),
        ),
        cost_estimate=cost,
    )(patches, w_mat, b_mat)

    # Slice off padding and restore NCHW to match F.conv2d semantics.
    # TODO(synk): if downstream consumes NHWC, drop this transpose (pure layout).
    out = out_flat[:M, :C_out].reshape(N, OH, OW, C_out).transpose(0, 3, 1, 2)
    return out


def _reference(x_nchw, weight_oihw, bias, stride, padding):
    # Pure-JAX reference (equivalent to F.conv2d + leaky_relu(0.2)), fp32.
    out = jax.lax.conv_general_dilated(
        x_nchw, weight_oihw,
        window_strides=(stride, stride),
        padding=[(padding, padding), (padding, padding)],
        dimension_numbers=("NCHW", "OIHW", "NCHW"),
    )
    out = out + bias.reshape(1, -1, 1, 1)
    return jnp.where(out > 0, out, 0.2 * out)


if __name__ == "__main__":
    # Conv2dRelu(in_channels=4, out_channels=8, kernel_size=(3, 3), stride=1, padding=1)
    N, C_in, H, W = 2, 4, 16, 16
    C_out, KH, KW = 8, 3, 3
    stride, padding = 1, 1

    key = jax.random.PRNGKey(0)
    kx, kw, kb = jax.random.split(key, 3)
    x = jax.random.normal(kx, (N, C_in, H, W), dtype=jnp.float32)
    # Deterministic param init (shapes from self.shape = {'weight': [O, I, KH, KW], 'bias': [O]})
    weight = jax.random.normal(kw, (C_out, C_in, KH, KW), dtype=jnp.float32) * 0.1
    bias = jax.random.normal(kb, (C_out,), dtype=jnp.float32) * 0.1

    out = conv2d_relu(x, weight, bias, stride=stride, padding=padding)
    out = jax.block_until_ready(out)

    ref = _reference(x, weight, bias, stride, padding)
    assert out.shape == (N, C_out, H, W), out.shape
    # bf16 MXU inputs with f32 accumulation -> ~1e-2 level tolerance vs fp32 ref.
    max_err = float(jnp.max(jnp.abs(out - ref)))
    assert jnp.allclose(out, ref, atol=3e-2, rtol=3e-2), max_err

    print("KERNEL_OK")
</pallas_src>

<mosaic_0001>
module attributes {stable_mosaic.version = 11 : i64} {
  func.func @_conv_relu_kernel(%arg0: i32, %arg1: memref<256x128xbf16, #tpu.memory_space<vmem>>, %arg2: memref<128x128xbf16, #tpu.memory_space<vmem>>, %arg3: memref<1x128xf32, #tpu.memory_space<vmem>>, %arg4: memref<256x128xf32, #tpu.memory_space<vmem>>) attributes {dimension_semantics = [#tpu.dimension_semantics<parallel>], iteration_bounds = array<i64: 2>, scalar_prefetch = 0 : i64, scratch_operands = 0 : i64, tpu.core_type = #tpu.core_type<tc>, window_params = [{transform_indices = @transform_0, window_bounds = array<i64: 256, 128>}, {pipeline_mode = #tpu.pipeline_mode<synchronous>, transform_indices = @transform_1, window_bounds = array<i64: 128, 128>}, {pipeline_mode = #tpu.pipeline_mode<synchronous>, transform_indices = @transform_2, window_bounds = array<i64: 1, 128>}, {transform_indices = @transform_3, window_bounds = array<i64: 256, 128>}]} {
    %c0 = arith.constant 0 : index
    %c0_0 = arith.constant 0 : index
    %0 = vector.load %arg1[%c0, %c0_0] : memref<256x128xbf16, #tpu.memory_space<vmem>>, vector<256x128xbf16>
    %c0_1 = arith.constant 0 : index
    %c0_2 = arith.constant 0 : index
    %1 = vector.load %arg2[%c0_1, %c0_2] : memref<128x128xbf16, #tpu.memory_space<vmem>>, vector<128x128xbf16>
    %cst = arith.constant dense<0.000000e+00> : vector<256x128xf32>
    %2 = tpu.matmul %0, %1, %cst {dimension_numbers = #tpu.dot_dimension_numbers<[1], [0], [0], [1], [0, 0, 1, 1], [], []>} : vector<256x128xbf16>, vector<128x128xbf16>, vector<256x128xf32> -> vector<256x128xf32>
    %c0_3 = arith.constant 0 : index
    %c0_4 = arith.constant 0 : index
    %3 = vector.load %arg3[%c0_3, %c0_4] : memref<1x128xf32, #tpu.memory_space<vmem>>, vector<1x128xf32>
    %4 = vector.broadcast %3 : vector<1x128xf32> to vector<256x128xf32>
    %5 = arith.addf %2, %4 : vector<256x128xf32>
    %cst_5 = arith.constant 0.000000e+00 : f32
    %6 = vector.broadcast %cst_5 : f32 to vector<256x128xf32>
    %7 = arith.cmpf ogt, %5, %6 : vector<256x128xf32>
    %cst_6 = arith.constant 2.000000e-01 : f32
    %8 = vector.broadcast %cst_6 : f32 to vector<256x128xf32>
    %9 = arith.mulf %8, %5 : vector<256x128xf32>
    %10 = arith.select %7, %5, %9 : vector<256x128xi1>, vector<256x128xf32>
    %c0_7 = arith.constant 0 : index
    %c0_8 = arith.constant 0 : index
    %11 = vector.load %arg4[%c0_7, %c0_8] : memref<256x128xf32, #tpu.memory_space<vmem>>, vector<256x128xf32>
    tpu.vector_store %arg4[%c0_7, %c0_8], %10 {strides = array<i32>} : memref<256x128xf32, #tpu.memory_space<vmem>>, vector<256x128xf32>,
    return
  }
  func.func @transform_0(%arg0: i32) -> (i32, i32) {
    %c0_i32 = arith.constant 0 : i32
    %c0_i32_0 = arith.constant 0 : i32
    return %arg0, %c0_i32 : i32, i32
  }
  func.func @transform_1(%arg0: i32) -> (i32, i32) {
    %c0_i32 = arith.constant 0 : i32
    %c0_i32_0 = arith.constant 0 : i32
    %c0_i32_1 = arith.constant 0 : i32
    return %c0_i32, %c0_i32_0 : i32, i32
  }
  func.func @transform_2(%arg0: i32) -> (i32, i32) {
    %c0_i32 = arith.constant 0 : i32
    %c0_i32_0 = arith.constant 0 : i32
    %c0_i32_1 = arith.constant 0 : i32
    return %c0_i32, %c0_i32_0 : i32, i32
  }
  func.func @transform_3(%arg0: i32) -> (i32, i32) {
    %c0_i32 = arith.constant 0 : i32
    %c0_i32_0 = arith.constant 0 : i32
    return %arg0, %c0_i32 : i32, i32
  }
}

</mosaic_0001>

<llo_original>
// kernel: conv2d_relu.1
$region0: #{conv2d_relu.1}
  #allocation0 [shape = 'u32[]', space=smem, size = 0x4, offset = 0x4, fixed_abs, tag = 'smem constant byte address 0x4 - core index']
  #allocation1 [shape = 'u32[144,128]{1,0:T(1,128)}', space=vmem, size = 0x12000, scoped, tag = 'internal scratch']
  %s0 = inlined_call_operand.vmem [shape: bf16[512,128], index: 0, kind: input, shape index: {}]
  %s1 = inlined_call_operand.vmem [shape: bf16[128,128], index: 1, kind: input, shape index: {}]
  %s2 = inlined_call_operand.vmem [shape: f32[1,128], index: 2, kind: input, shape index: {}]
  %s3 = inlined_call_operand.vmem [shape: f32[512,128], index: 3, kind: output, shape index: {}]
  %s4 = sld [smem:[#allocation0]]
  $region45: #{conv2d_relu.1} parent=0
    _
  %s6 = ssub.s32 1, %s4
  %s7 = scalar_select 0, %s6, %s4
  loop: start=0, step=1, limit=4
  $region2: #{conv2d_relu.1} parent=0 // loop_pre_header
    _
  $region3: #{conv2d_relu.1} parent=0 // loop_header
    %s9 = sphi 0, %s13
    %p10 = scmp.ge.s32.totalorder %s9, 4
    %s19 = sphi 0, %s21
    %s22 = sphi 0, %s19
    %s23 = sphi 0, %s22
    %s39 = sphi 0, %s23
    %s43 = sphi 0, %s43
    %s45 = sphi 0, %s43
    %s46 = sphi 0, %s45
    %s60 = sphi 0, %s46
    %s64 = sphi 0, %s64
    %s66 = sphi 0, %s64
    %s67 = sphi 0, %s66
    %s81 = sphi 0, %s67
    %s87 = sphi 0, %s89
    %s90 = sphi 0, %s87
    %s91 = sphi 0, %s90
    %s107 = sphi 0, %s91
  $region4: #{conv2d_relu.1} parent=0 // loop_header_branch
    %12 = sbr.rel (%p10) target = $region8
  $region5: #{conv2d_relu.1} parent=0 // loop_body
    %s14 = ssub.s32 %s9, 1
    %s15 = ssub.s32 %s9, 2
    %s16 = sadd.s32 %s9, 1
    %s17 = ssub.s32 %s9, %s16
    %p18 = scmp.eq.s32.totalorder %s17, 0
    %s20 = sadd.s32 %s19, 1
    %s21 = scalar_select %p18, %s19, %s20
    %p24 = pneg %p18
    %p25 = scmp.eq.s32.totalorder %s9, 1
    %p26 = por %p24, %p25
    %p27 = scmp.ne.s32.totalorder %s19, %s22
    %p28 = scmp.eq.s32.totalorder %s9, 0
    %p29 = por %p27, %p28
    %p30 = scmp.ne.s32.totalorder %s19, %s22
    %p31 = scmp.eq.s32.totalorder %s14, 1
    %p32 = por %p30, %p31
    %p33 = scmp.ne.s32.totalorder %s22, %s23
    %p34 = scmp.eq.s32.totalorder %s14, 0
    %p35 = por %p33, %p34
    %p36 = scmp.ne.s32.totalorder %s22, %s23
    %p37 = scmp.eq.s32.totalorder %s15, 1
    %p38 = por %p36, %p37
    %p40 = scmp.ne.s32.totalorder %s23, %s39
    %p41 = scmp.eq.s32.totalorder %s15, 0
    %p42 = por %p40, %p41
    %s44 = sadd.s32 %s43, 1
    %p47 = scmp.eq.s32.totalorder %s9, 1
    %p48 = scmp.ne.s32.totalorder %s43, %s45
    %p49 = scmp.eq.s32.totalorder %s9, 0
    %p50 = por %p48, %p49
    %p51 = scmp.ne.s32.totalorder %s43, %s45
    %p52 = scmp.eq.s32.totalorder %s14, 1
    %p53 = por %p51, %p52
    %p54 = scmp.ne.s32.totalorder %s45, %s46
    %p55 = scmp.eq.s32.totalorder %s14, 0
    %p56 = por %p54, %p55
    %p57 = scmp.ne.s32.totalorder %s45, %s46
    %p58 = scmp.eq.s32.totalorder %s15, 1
    %p59 = por %p57, %p58
    %p61 = scmp.ne.s32.totalorder %s46, %s60
    %p62 = scmp.eq.s32.totalorder %s15, 0
    %p63 = por %p61, %p62
    %s65 = sadd.s32 %s64, 1
    %p68 = scmp.eq.s32.totalorder %s9, 1
    %p69 = scmp.ne.s32.totalorder %s64, %s66
    %p70 = scmp.eq.s32.totalorder %s9, 0
    %p71 = por %p69, %p70
    %p72 = scmp.ne.s32.totalorder %s64, %s66
    %p73 = scmp.eq.s32.totalorder %s14, 1
    %p74 = por %p72, %p73
    %p75 = scmp.ne.s32.totalorder %s66, %s67
    %p76 = scmp.eq.s32.totalorder %s14, 0
    %p77 = por %p75, %p76
    %p78 = scmp.ne.s32.totalorder %s66, %s67
    %p79 = scmp.eq.s32.totalorder %s15, 1
    %p80 = por %p78, %p79
    %p82 = scmp.ne.s32.totalorder %s67, %s81
    %p83 = scmp.eq.s32.totalorder %s15, 0
    %p84 = por %p82, %p83
    %s85 = ssub.s32 %s9, %s16
    %p86 = scmp.eq.s32.totalorder %s85, 0
    %s88 = sadd.s32 %s87, 1
    %s89 = scalar_select %p86, %s87, %s88
    %p92 = pneg %p86
    %p93 = scmp.eq.s32.totalorder %s9, 1
    %p94 = por %p92, %p93
    %p95 = scmp.ne.s32.totalorder %s87, %s90
    %p96 = scmp.eq.s32.totalorder %s9, 0
    %p97 = por %p95, %p96
    %p98 = scmp.ne.s32.totalorder %s87, %s90
    %p99 = scmp.eq.s32.totalorder %s14, 1
    %p100 = por %p98, %p99
    %p101 = scmp.ne.s32.totalorder %s90, %s91
    %p102 = scmp.eq.s32.totalorder %s14, 0
    %p103 = por %p101, %p102
    %p104 = scmp.ne.s32.totalorder %s90, %s91
    %p105 = scmp.eq.s32.totalorder %s15, 1
    %p106 = por %p104, %p105
    %p108 = scmp.ne.s32.totalorder %s91, %s107
    %p109 = scmp.eq.s32.totalorder %s15, 0
    %p110 = por %p108, %p109
    %p111 = scmp.le.s32.totalorder 1, %s9
    %p112 = scmp.lt.s32.totalorder %s9, 3
    %p113 = pnand %p111, %p112
    %p114 = pneg %p113
    // Predicated region
    $region9: #{conv2d_relu.1} parent=5 // pred_check
      _
    $region10: #{conv2d_relu.1} parent=5 // pred_check_branch
      %116 = sbr.rel (%p113) target = $region12
    $region11: #{conv2d_relu.1} parent=5 // pred_region
      %s117 = ssub.s32 %s9, 1
      // Predicated region
      $region13: #{conv2d_relu.1} parent=11 // pred_check
        %p118 = pneg %p56
      $region14: #{conv2d_relu.1} parent=11 // pred_check_branch
        %120 = sbr.rel (%p118) target = $region16
      $region15: #{conv2d_relu.1} parent=11 // pred_region
        _
      $region16: #{conv2d_relu.1} parent=11 // pred_fallthru
        _
      // Predicated region
      $region17: #{conv2d_relu.1} parent=11 // pred_check
        %p121 = pneg %p77
      $region18: #{conv2d_relu.1} parent=11 // pred_check_branch
        %123 = sbr.rel (%p121) target = $region20
      $region19: #{conv2d_relu.1} parent=11 // pred_region
        _
      $region20: #{conv2d_relu.1} parent=11 // pred_fallthru
        _
    $region12: #{conv2d_relu.1} parent=5 // pred_fallthru
      _
    %p124 = scmp.lt.s32.totalorder %s9, 2
    // Predicated region
    $region21: #{conv2d_relu.1} parent=5 // pred_check
      %p125 = pneg %p124
    $region22: #{conv2d_relu.1} parent=5 // pred_check_branch
      %127 = sbr.rel (%p125) target = $region24
    $region23: #{conv2d_relu.1} parent=5 // pred_region
      // Predicated region
      $region25: #{conv2d_relu.1} parent=23 // pred_check
        %p128 = pneg %p29
      $region26: #{conv2d_relu.1} parent=23 // pred_check_branch
        %130 = sbr.rel (%p128) target = $region28
      $region27: #{conv2d_relu.1} parent=23 // pred_region
        %s131 = smul.u32 32, %s9
        %p132 = scmp.lt.s32.totalorder %s131, 63
        %s133 = scalar_select %p132, %s131, 63
        %s134 = smul.addr %s133, 4
        %s135 = scalar_lea.vmem %s0, %s134
        %s136 = smul.u32 32, %s9
      $region28: #{conv2d_relu.1} parent=23 // pred_fallthru
        _
    $region24: #{conv2d_relu.1} parent=5 // pred_fallthru
      _
    %p137 = scmp.le.s32.totalorder 1, %s9
    %p138 = scmp.lt.s32.totalorder %s9, 3
    %p139 = pnand %p137, %p138
    %p140 = pneg %p139
    // Predicated region
    $region29: #{conv2d_relu.1} parent=5 // pred_check
      _
    $region30: #{conv2d_relu.1} parent=5 // pred_check_branch
      %142 = sbr.rel (%p139) target = $region32
    $region31: #{conv2d_relu.1} parent=5 // pred_region
      %s143 = ssub.s32 %s9, 1
      %s144 = smul.u32 32, %s14
      %p145 = scmp.lt.s32.totalorder %s144, 63
      %s146 = scalar_select %p145, %s144, 63
      %s147 = smul.addr %s146, 4
      %s148 = scalar_lea.vmem %s0, %s147
      %p149 = pneg %p35
      %p150 = pneg %p32
      %p151 = pneg %p56
      %p152 = pneg %p53
      %p153 = pneg %p77
      %p154 = pneg %p74
      %p155 = pneg %p103
      %p156 = pneg %p100
      %s157 = smul.u32 32, %s14
      %p158 = scmp.lt.s32.totalorder %s157, 63
      %s159 = scalar_select %p158, %s157, 63
      %s160 = smul.addr %s159, 8
      %s161 = scalar_lea.vmem %s3, %s160
      %s162 = smul.u32 32, %s14
      %p163 = scmp.lt.s32.totalorder %s162, 63
      %s164 = scalar_select %p163, %s162, 63
      %s165 = smul.addr %s164, 4
      %s166 = scalar_lea.vmem %s0, %s165
      %s167 = smul.u32 32, %s14
      %s168 = smul.u32 32, %s14
      %p169 = scmp.lt.s32.totalorder %s168, 63
      %s170 = scalar_select %p169, %s168, 63
      %s171 = smul.addr %s170, 8
      %s172 = scalar_lea.vmem %s3, %s171
      %s173 = smul.u32 32, %s14
      %v175 = vld [vmem:[%s166] sm:$0xf]
      %v176 = vld [vmem:[%s166 + $0x4] sm:$0xf]
      %v177 = vld [vmem:[%s166 + $0x8] sm:$0xf]
      %v178 = vld [vmem:[%s166 + $0xc] sm:$0xf]
      %v179 = vld [vmem:[%s166 + $0x10] sm:$0xf]
      %v180 = vld [vmem:[%s166 + $0x14] sm:$0xf]
      %v181 = vld [vmem:[%s166 + $0x18] sm:$0xf]
      %v182 = vld [vmem:[%s166 + $0x1c] sm:$0xf]
      %v183 = vld [vmem:[%s166 + $0x20] sm:$0xf]
      %v184 = vld [vmem:[%s166 + $0x24] sm:$0xf]
      %v185 = vld [vmem:[%s166 + $0x28] sm:$0xf]
      %v186 = vld [vmem:[%s166 + $0x2c] sm:$0xf]
      %v187 = vld [vmem:[%s166 + $0x30] sm:$0xf]
      %v188 = vld [vmem:[%s166 + $0x34] sm:$0xf]
      %v189 = vld [vmem:[%s166 + $0x38] sm:$0xf]
      %v190 = vld [vmem:[%s166 + $0x3c] sm:$0xf]
      %v191 = vld [vmem:[%s166 + $0x40] sm:$0xf]
      %v192 = vld [vmem:[%s166 + $0x44] sm:$0xf]
      %v193 = vld [vmem:[%s166 + $0x48] sm:$0xf]
      %v194 = vld [vmem:[%s166 + $0x4c] sm:$0xf]
      %v195 = vld [vmem:[%s166 + $0x50] sm:$0xf]
      %v196 = vld [vmem:[%s166 + $0x54] sm:$0xf]
      %v197 = vld [vmem:[%s166 + $0x58] sm:$0xf]
      %v198 = vld [vmem:[%s166 + $0x5c] sm:$0xf]
      %v199 = vld [vmem:[%s166 + $0x60] sm:$0xf]
      %v200 = vld [vmem:[%s166 + $0x64] sm:$0xf]
      %v201 = vld [vmem:[%s166 + $0x68] sm:$0xf]
      %v202 = vld [vmem:[%s166 + $0x6c] sm:$0xf]
      %v203 = vld [vmem:[%s166 + $0x70] sm:$0xf]
      %v204 = vld [vmem:[%s166 + $0x74] sm:$0xf]
      %v205 = vld [vmem:[%s166 + $0x78] sm:$0xf]
      %v206 = vld [vmem:[%s166 + $0x7c] sm:$0xf]
      %v207 = vld [vmem:[%s1] sm:$0xf]
      %v208 = vld [vmem:[%s1 + $0x4] sm:$0xf]
      %v209 = vld [vmem:[%s1 + $0x8] sm:$0xf]
      %v210 = vld [vmem:[%s1 + $0xc] sm:$0xf]
      %v211 = vld [vmem:[%s1 + $0x10] sm:$0xf]
      %v212 = vld [vmem:[%s1 + $0x14] sm:$0xf]
      %v213 = vld [vmem:[%s1 + $0x18] sm:$0xf]
      %v214 = vld [vmem:[%s1 + $0x1c] sm:$0xf]
      %v215 = vld [vmem:[%s1 + $0x20] sm:$0xf]
      %v216 = vld [vmem:[%s1 + $0x24] sm:$0xf]
      %v217 = vld [vmem:[%s1 + $0x28] sm:$0xf]
      %v218 = vld [vmem:[%s1 + $0x2c] sm:$0xf]
      %v219 = vld [vmem:[%s1 + $0x30] sm:$0xf]
      %v220 = vld [vmem:[%s1 + $0x34] sm:$0xf]
      %v221 = vld [vmem:[%s1 + $0x38] sm:$0xf]
      %v222 = vld [vmem:[%s1 + $0x3c] sm:$0xf]
      %v223 = vld [vmem:[%s2] sm:$0x1]
      %v225 = vlaneseq
      %v226 = vshrl.u32 %v225, 7
      %v227 = vsub.s32 0, %v226
      %v228 = vrot.slane %v223, %v227
      %v262 = vunpack.c.l.b16 %v175
      %v263 = vunpack.c.l.b16 %v176
      %v264 = vunpack.c.l.b16 %v177
      %v265 = vunpack.c.l.b16 %v178
      %v266 = vunpack.c.l.b16 %v179
      %v267 = vunpack.c.l.b16 %v180
      %v268 = vunpack.c.l.b16 %v181
      %v269 = vunpack.c.l.b16 %v182
      %v270 = vunpack.c.l.b16 %v183
      %v271 = vunpack.c.l.b16 %v184
      %v272 = vunpack.c.l.b16 %v185
      %v273 = vunpack.c.l.b16 %v186
      %v274 = vunpack.c.l.b16 %v187
      %v275 = vunpack.c.l.b16 %v188
      %v276 = vunpack.c.l.b16 %v189
      %v277 = vunpack.c.l.b16 %v190
      %v278 = vunpack.c.l.b16 %v191
      %v279 = vunpack.c.l.b16 %v192
      %v280 = vunpack.c.l.b16 %v193
      %v281 = vunpack.c.l.b16 %v194
      %v282 = vunpack.c.l.b16 %v195
      %v283 = vunpack.c.l.b16 %v196
      %v284 = vunpack.c.l.b16 %v197
      %v285 = vunpack.c.l.b16 %v198
      %v286 = vunpack.c.l.b16 %v199
      %v287 = vunpack.c.l.b16 %v200
      %v288 = vunpack.c.l.b16 %v201
      %v289 = vunpack.c.l.b16 %v202
      %v290 = vunpack.c.l.b16 %v203
      %v291 = vunpack.c.l.b16 %v204
      %v292 = vunpack.c.l.b16 %v205
      %v293 = vunpack.c.l.b16 %v206
      %v294 = vpack.c.b16 %v263, %v262
      %v295 = vpack.c.b16 %v265, %v264
      %v296 = vpack.c.b16 %v267, %v266
      %v297 = vpack.c.b16 %v269, %v268
      %v298 = vpack.c.b16 %v271, %v270
      %v299 = vpack.c.b16 %v273, %v272
      %v300 = vpack.c.b16 %v275, %v274
      %v301 = vpack.c.b16 %v277, %v276
      %v302 = vpack.c.b16 %v279, %v278
      %v303 = vpack.c.b16 %v281, %v280
      %v304 = vpack.c.b16 %v283, %v282
      %v305 = vpack.c.b16 %v285, %v284
      %v306 = vpack.c.b16 %v287, %v286
      %v307 = vpack.c.b16 %v289, %v288
      %v308 = vpack.c.b16 %v291, %v290
      %v309 = vpack.c.b16 %v293, %v292
      %v342 = vunpack.c.l.b16 %v207
      %v343 = vunpack.c.l.b16 %v208
      %v344 = vunpack.c.l.b16 %v209
      %v345 = vunpack.c.l.b16 %v210
      %v346 = vunpack.c.l.b16 %v211
      %v347 = vunpack.c.l.b16 %v212
      %v348 = vunpack.c.l.b16 %v213
      %v349 = vunpack.c.l.b16 %v214
      %v350 = vunpack.c.l.b16 %v215
      %v351 = vunpack.c.l.b16 %v216
      %v352 = vunpack.c.l.b16 %v217
      %v353 = vunpack.c.l.b16 %v218
      %v354 = vunpack.c.l.b16 %v219
      %v355 = vunpack.c.l.b16 %v220
      %v356 = vunpack.c.l.b16 %v221
      %v357 = vunpack.c.l.b16 %v222
      %v358 = vpack.c.b16 %v343, %v342
      %v359 = vpack.c.b16 %v345, %v344
      %v360 = vpack.c.b16 %v347, %v346
      %v361 = vpack.c.b16 %v349, %v348
      %v362 = vpack.c.b16 %v351, %v350
      %v363 = vpack.c.b16 %v353, %v352
      %v364 = vpack.c.b16 %v355, %v354
      %v365 = vpack.c.b16 %v357, %v356
      %374 = vmatprep.subr.bf16.mxu0 0
      %375 = vmatpush1.bf16.msra.mxu0 %v358
      %376 = vmatprep.subr.bf16.mxu0 0
      %377 = vmatpush1.bf16.msra.mxu0 %v359
      %378 = vmatprep.subr.bf16.mxu0 0
      %379 = vmatpush1.bf16.msra.mxu0 %v360
      %380 = vmatprep.subr.bf16.mxu0 0
      %381 = vmatpush1.bf16.msra.mxu0 %v361
      %382 = vmatprep.subr.bf16.mxu0 0
      %383 = vmatpush1.bf16.msra.mxu0 %v362
      %384 = vmatprep.subr.bf16.mxu0 0
      %385 = vmatpush1.bf16.msra.mxu0 %v363
      %386 = vmatprep.subr.bf16.mxu0 0
      %387 = vmatpush1.bf16.msra.mxu0 %v364
      %388 = vmatprep.subr.bf16.mxu0 0
      %389 = vmatpush1.bf16.msra.mxu0 %v365
      %390 = vmatprep.subr.bf16.mxu0 0
      %391 = vmatpush1.bf16.msra.mxu0 0
      %392 = vmatprep.subr.bf16.mxu0 0
      %393 = vmatpush1.bf16.msra.mxu0 0
      %394 = vmatprep.subr.bf16.mxu0 0
      %395 = vmatpush1.bf16.msra.mxu0 0
      %396 = vmatprep.subr.bf16.mxu0 0
      %397 = vmatpush1.bf16.msra.mxu0 0
      %398 = vmatprep.subr.bf16.mxu0 0
      %399 = vmatpush1.bf16.msra.mxu0 0
      %400 = vmatprep.subr.bf16.mxu0 0
      %401 = vmatpush1.bf16.msra.mxu0 0
      %402 = vmatprep.subr.bf16.mxu0 0
      %403 = vmatpush1.bf16.msra.mxu0 0
      %404 = vmatprep.subr.bf16.mxu0 0
      %405 = vmatpush1.bf16.msra.mxu0 0
      %406 = vmatprep.mubr.bf16.mxu0 0
      %407 = vmatmul.mubr.bf16.gmra.mrb[0].mxu0 %v294
      %v408 = vpop.f32.mrb[0].mxu0
      %v409 = vadd.f32 %v228, %v408
      %v410 = vpop.f32.mrb[0].mxu0
      %v411 = vpop.f32.mrb[0].mxu0
      %v412 = vadd.f32 %v228, %v411
      %v413 = vpop.f32.mrb[0].mxu0
      %414 = vmatprep.mubr.bf16.mxu0 0
      %415 = vmatmul.mubr.bf16.gmra.mrb[0].mxu0 %v295
      %v416 = vpop.f32.mrb[0].mxu0
      %v417 = vadd.f32 %v228, %v416
      %v418 = vpop.f32.mrb[0].mxu0
      %v419 = vpop.f32.mrb[0].mxu0
      %v420 = vadd.f32 %v228, %v419
      %v421 = vpop.f32.mrb[0].mxu0
      %422 = vmatprep.mubr.bf16.mxu0 0
      %423 = vmatmul.mubr.bf16.gmra.mrb[0].mxu0 %v296
      %v424 = vpop.f32.mrb[0].mxu0
      %v425 = vadd.f32 %v228, %v424
      %v426 = vpop.f32.mrb[0].mxu0
      %v427 = vpop.f32.mrb[0].mxu0
      %v428 = vadd.f32 %v228, %v427
      %v429 = vpop.f32.mrb[0].mxu0
      %430 = vmatprep.mubr.bf16.mxu0 0
      %431 = vmatmul.mubr.bf16.gmra.mrb[0].mxu0 %v297
      %v432 = vpop.f32.mrb[0].mxu0
      %v433 = vadd.f32 %v228, %v432
      %v434 = vpop.f32.mrb[0].mxu0
      %v435 = vpop.f32.mrb[0].mxu0
      %v436 = vadd.f32 %v228, %v435
      %v437 = vpop.f32.mrb[0].mxu0
      %438 = vmatprep.mubr.bf16.mxu0 0
      %439 = vmatmul.mubr.bf16.gmra.mrb[0].mxu0 %v298
      %v440 = vpop.f32.mrb[0].mxu0
      %v441 = vadd.f32 %v228, %v440
      %v442 = vpop.f32.mrb[0].mxu0
      %v443 = vpop.f32.mrb[0].mxu0
      %v444 = vadd.f32 %v228, %v443
      %v445 = vpop.f32.mrb[0].mxu0
      %446 = vmatprep.mubr.bf16.mxu0 0
      %447 = vmatmul.mubr.bf16.gmra.mrb[0].mxu0 %v299
      %v448 = vpop.f32.mrb[0].mxu0
      %v449 = vadd.f32 %v228, %v448
      %v450 = vpop.f32.mrb[0].mxu0
      %v451 = vpop.f32.mrb[0].mxu0
      %v452 = vadd.f32 %v228, %v451
      %v453 = vpop.f32.mrb[0].mxu0
      %454 = vmatprep.mubr.bf16.mxu0 0
      %455 = vmatmul.mubr.bf16.gmra.mrb[0].mxu0 %v300
      %v456 = vpop.f32.mrb[0].mxu0
      %v457 = vadd.f32 %v228, %v456
      %v458 = vpop.f32.mrb[0].mxu0
      %v459 = vpop.f32.mrb[0].mxu0
      %v460 = vadd.f32 %v228, %v459
      %v461 = vpop.f32.mrb[0].mxu0
      %462 = vmatprep.mubr.bf16.mxu0 0
      %463 = vmatmul.mubr.bf16.gmra.mrb[0].mxu0 %v301
      %v464 = vpop.f32.mrb[0].mxu0
      %v465 = vadd.f32 %v228, %v464
      %v466 = vpop.f32.mrb[0].mxu0
      %v467 = vpop.f32.mrb[0].mxu0
      %v468 = vadd.f32 %v228, %v467
      %v469 = vpop.f32.mrb[0].mxu0
      %470 = vmatprep.mubr.bf16.mxu0 0
      %471 = vmatmul.mubr.bf16.gmra.mrb[0].mxu0 %v302
      %v472 = vpop.f32.mrb[0].mxu0
      %v473 = vadd.f32 %v228, %v472
      %v474 = vpop.f32.mrb[0].mxu0
      %v475 = vpop.f32.mrb[0].mxu0
      %v476 = vadd.f32 %v228, %v475
      %v477 = vpop.f32.mrb[0].mxu0
      %478 = vmatprep.mubr.bf16.mxu0 0
      %479 = vmatmul.mubr.bf16.gmra.mrb[0].mxu0 %v303
      %v480 = vpop.f32.mrb[0].mxu0
      %v481 = vadd.f32 %v228, %v480
      %v482 = vpop.f32.mrb[0].mxu0
      %v483 = vpop.f32.mrb[0].mxu0
      %v484 = vadd.f32 %v228, %v483
      %v485 = vpop.f32.mrb[0].mxu0
      %486 = vmatprep.mubr.bf16.mxu0 0
      %487 = vmatmul.mubr.bf16.gmra.mrb[0].mxu0 %v304
      %v488 = vpop.f32.mrb[0].mxu0
      %v489 = vadd.f32 %v228, %v488
      %v490 = vpop.f32.mrb[0].mxu0
      %v491 = vpop.f32.mrb[0].mxu0
      %v492 = vadd.f32 %v228, %v491
      %v493 = vpop.f32.mrb[0].mxu0
      %494 = vmatprep.mubr.bf16.mxu0 0
      %495 = vmatmul.mubr.bf16.gmra.mrb[0].mxu0 %v305
      %v496 = vpop.f32.mrb[0].mxu0
      %v497 = vadd.f32 %v228, %v496
      %v498 = vpop.f32.mrb[0].mxu0
      %v499 = vpop.f32.mrb[0].mxu0
      %v500 = vadd.f32 %v228, %v499
      %v501 = vpop.f32.mrb[0].mxu0
      %502 = vmatprep.mubr.bf16.mxu0 0
      %503 = vmatmul.mubr.bf16.gmra.mrb[0].mxu0 %v306
      %v504 = vpop.f32.mrb[0].mxu0
      %v505 = vadd.f32 %v228, %v504
      %v506 = vpop.f32.mrb[0].mxu0
      %v507 = vpop.f32.mrb[0].mxu0
      %v508 = vadd.f32 %v228, %v507
      %v509 = vpop.f32.mrb[0].mxu0
      %510 = vmatprep.mubr.bf16.mxu0 0
      %511 = vmatmul.mubr.bf16.gmra.mrb[0].mxu0 %v307
      %v512 = vpop.f32.mrb[0].mxu0
      %v513 = vadd.f32 %v228, %v512
      %v514 = vpop.f32.mrb[0].mxu0
      %v515 = vpop.f32.mrb[0].mxu0
      %v516 = vadd.f32 %v228, %v515
      %v517 = vpop.f32.mrb[0].mxu0
      %518 = vmatprep.mubr.bf16.mxu0 0
      %519 = vmatmul.mubr.bf16.gmra.mrb[0].mxu0 %v308
      %v520 = vpop.f32.mrb[0].mxu0
      %v521 = vadd.f32 %v228, %v520
      %v522 = vpop.f32.mrb[0].mxu0
      %v523 = vpop.f32.mrb[0].mxu0
      %v524 = vadd.f32 %v228, %v523
      %v525 = vpop.f32.mrb[0].mxu0
      %526 = vmatprep.mubr.bf16.mxu0 0
      %527 = vmatmul.mubr.bf16.gmra.mrb[0].mxu0 %v309
      %v528 = vpop.f32.mrb[0].mxu0
      %v529 = vadd.f32 %v228, %v528
      %v530 = vpop.f32.mrb[0].mxu0
      %v531 = vpop.f32.mrb[0].mxu0
      %v532 = vadd.f32 %v228, %v531
      %v533 = vpop.f32.mrb[0].mxu0
      %534 = vdwg.mxu0
      %vm535 = vcmp.gt.f32.partialorder %v409, 0.0
      %vm536 = vcmp.gt.f32.partialorder %v412, 0.0
      %vm537 = vcmp.gt.f32.partialorder %v417, 0.0
      %vm538 = vcmp.gt.f32.partialorder %v420, 0.0
      %vm539 = vcmp.gt.f32.partialorder %v425, 0.0
      %vm540 = vcmp.gt.f32.partialorder %v428, 0.0
      %vm541 = vcmp.gt.f32.partialorder %v433, 0.0
      %vm542 = vcmp.gt.f32.partialorder %v436, 0.0
      %vm543 = vcmp.gt.f32.partialorder %v441, 0.0
      %vm544 = vcmp.gt.f32.partialorder %v444, 0.0
      %vm545 = vcmp.gt.f32.partialorder %v449, 0.0
      %vm546 = vcmp.gt.f32.partialorder %v452, 0.0
      %vm547 = vcmp.gt.f32.partialorder %v457, 0.0
      %vm548 = vcmp.gt.f32.partialorder %v460, 0.0
      %vm549 = vcmp.gt.f32.partialorder %v465, 0.0
      %vm550 = vcmp.gt.f32.partialorder %v468, 0.0
      %vm551 = vcmp.gt.f32.partialorder %v473, 0.0
      %vm552 = vcmp.gt.f32.partialorder %v476, 0.0
      %vm553 = vcmp.gt.f32.partialorder %v481, 0.0
      %vm554 = vcmp.gt.f32.partialorder %v484, 0.0
      %vm555 = vcmp.gt.f32.partialorder %v489, 0.0
      %vm556 = vcmp.gt.f32.partialorder %v492, 0.0
      %vm557 = vcmp.gt.f32.partialorder %v497, 0.0
      %vm558 = vcmp.gt.f32.partialorder %v500, 0.0
      %vm559 = vcmp.gt.f32.partialorder %v505, 0.0
      %vm560 = vcmp.gt.f32.partialorder %v508, 0.0
      %vm561 = vcmp.gt.f32.partialorder %v513, 0.0
      %vm562 = vcmp.gt.f32.partialorder %v516, 0.0
      %vm563 = vcmp.gt.f32.partialorder %v521, 0.0
      %vm564 = vcmp.gt.f32.partialorder %v524, 0.0
      %vm565 = vcmp.gt.f32.partialorder %v529, 0.0
      %vm566 = vcmp.gt.f32.partialorder %v532, 0.0
      %v567 = vmul.f32 %v409, 0.2
      %v568 = vmul.f32 %v412, 0.2
      %v569 = vmul.f32 %v417, 0.2
      %v570 = vmul.f32 %v420, 0.2
      %v571 = vmul.f32 %v425, 0.2
      %v572 = vmul.f32 %v428, 0.2
      %v573 = vmul.f32 %v433, 0.2
      %v574 = vmul.f32 %v436, 0.2
      %v575 = vmul.f32 %v441, 0.2
      %v576 = vmul.f32 %v444, 0.2
      %v577 = vmul.f32 %v449, 0.2
      %v578 = vmul.f32 %v452, 0.2
      %v579 = vmul.f32 %v457, 0.2
      %v580 = vmul.f32 %v460, 0.2
      %v581 = vmul.f32 %v465, 0.2
      %v582 = vmul.f32 %v468, 0.2
      %v583 = vmul.f32 %v473, 0.2
      %v584 = vmul.f32 %v476, 0.2
      %v585 = vmul.f32 %v481, 0.2
      %v586 = vmul.f32 %v484, 0.2
      %v587 = vmul.f32 %v489, 0.2
      %v588 = vmul.f32 %v492, 0.2
      %v589 = vmul.f32 %v497, 0.2
      %v590 = vmul.f32 %v500, 0.2
      %v591 = vmul.f32 %v505, 0.2
      %v592 = vmul.f32 %v508, 0.2
      %v593 = vmul.f32 %v513, 0.2
      %v594 = vmul.f32 %v516, 0.2
      %v595 = vmul.f32 %v521, 0.2
      %v596 = vmul.f32 %v524, 0.2
      %v597 = vmul.f32 %v529, 0.2
      %v598 = vmul.f32 %v532, 0.2
      %v599 = vsel %vm535, %v409, %v567
      %v600 = vsel %vm536, %v412, %v568
      %v601 = vsel %vm537, %v417, %v569
      %v602 = vsel %vm538, %v420, %v570
      %v603 = vsel %vm539, %v425, %v571
      %v604 = vsel %vm540, %v428, %v572
      %v605 = vsel %vm541, %v433, %v573
      %v606 = vsel %vm542, %v436, %v574
      %v607 = vsel %vm543, %v441, %v575
      %v608 = vsel %vm544, %v444, %v576
      %v609 = vsel %vm545, %v449, %v577
      %v610 = vsel %vm546, %v452, %v578
      %v611 = vsel %vm547, %v457, %v579
      %v612 = vsel %vm548, %v460, %v580
      %v613 = vsel %vm549, %v465, %v581
      %v614 = vsel %vm550, %v468, %v582
      %v615 = vsel %vm551, %v473, %v583
      %v616 = vsel %vm552, %v476, %v584
      %v617 = vsel %vm553, %v481, %v585
      %v618 = vsel %vm554, %v484, %v586
      %v619 = vsel %vm555, %v489, %v587
      %v620 = vsel %vm556, %v492, %v588
      %v621 = vsel %vm557, %v497, %v589
      %v622 = vsel %vm558, %v500, %v590
      %v623 = vsel %vm559, %v505, %v591
      %v624 = vsel %vm560, %v508, %v592
      %v625 = vsel %vm561, %v513, %v593
      %v626 = vsel %vm562, %v516, %v594
      %v627 = vsel %vm563, %v521, %v595
      %v628 = vsel %vm564, %v524, %v596
      %v629 = vsel %vm565, %v529, %v597
      %v630 = vsel %vm566, %v532, %v598
      %631 = vst [vmem:[%s172] sm:$0xff] %v599
      %632 = vst [vmem:[%s172 + $0x8] sm:$0xff] %v600
      %633 = vst [vmem:[%s172 + $0x10] sm:$0xff] %v601
      %634 = vst [vmem:[%s172 + $0x18] sm:$0xff] %v602
      %635 = vst [vmem:[%s172 + $0x20] sm:$0xff] %v603
      %636 = vst [vmem:[%s172 + $0x28] sm:$0xff] %v604
      %637 = vst [vmem:[%s172 + $0x30] sm:$0xff] %v605
      %638 = vst [vmem:[%s172 + $0x38] sm:$0xff] %v606
      %639 = vst [vmem:[%s172 + $0x40] sm:$0xff] %v607
      %640 = vst [vmem:[%s172 + $0x48] sm:$0xff] %v608
      %641 = vst [vmem:[%s172 + $0x50] sm:$0xff] %v609
      %642 = vst [vmem:[%s172 + $0x58] sm:$0xff] %v610
      %643 = vst [vmem:[%s172 + $0x60] sm:$0xff] %v611
      %644 = vst [vmem:[%s172 + $0x68] sm:$0xff] %v612
      %645 = vst [vmem:[%s172 + $0x70] sm:$0xff] %v613
      %646 = vst [vmem:[%s172 + $0x78] sm:$0xff] %v614
      %647 = vst [vmem:[%s172 + $0x80] sm:$0xff] %v615
      %648 = vst [vmem:[%s172 + $0x88] sm:$0xff] %v616
      %649 = vst [vmem:[%s172 + $0x90] sm:$0xff] %v617
      %650 = vst [vmem:[%s172 + $0x98] sm:$0xff] %v618
      %651 = vst [vmem:[%s172 + $0xa0] sm:$0xff] %v619
      %652 = vst [vmem:[%s172 + $0xa8] sm:$0xff] %v620
      %653 = vst [vmem:[%s172 + $0xb0] sm:$0xff] %v621
      %654 = vst [vmem:[%s172 + $0xb8] sm:$0xff] %v622
      %655 = vst [vmem:[%s172 + $0xc0] sm:$0xff] %v623
      %656 = vst [vmem:[%s172 + $0xc8] sm:$0xff] %v624
      %657 = vst [vmem:[%s172 + $0xd0] sm:$0xff] %v625
      %658 = vst [vmem:[%s172 + $0xd8] sm:$0xff] %v626
      %659 = vst [vmem:[%s172 + $0xe0] sm:$0xff] %v627
      %660 = vst [vmem:[%s172 + $0xe8] sm:$0xff] %v628
      %661 = vst [vmem:[%s172 + $0xf0] sm:$0xff] %v629
      %662 = vst [vmem:[%s172 + $0xf8] sm:$0xff] %v630
      %s663 = smul.u32 32, %s14
      %p664 = scmp.lt.s32.totalorder %s663, 63
      %s665 = scalar_select %p664, %s663, 63
      %s666 = smul.addr %s665, 8
      %s667 = scalar_lea.vmem %s3, %s666
      // Predicated region
      $region33: #{conv2d_relu.1} parent=31 // pred_check
        %p668 = pneg %p100
      $region34: #{conv2d_relu.1} parent=31 // pred_check_branch
        %670 = sbr.rel (%p668) target = $region36
      $region35: #{conv2d_relu.1} parent=31 // pred_region
        %s671 = smul.u32 32, %s14
      $region36: #{conv2d_relu.1} parent=31 // pred_fallthru
        _
    $region32: #{conv2d_relu.1} parent=5 // pred_fallthru
      _
    %p672 = scmp.le.s32.totalorder 2, %s9
    // Predicated region
    $region37: #{conv2d_relu.1} parent=5 // pred_check
      %p673 = pneg %p672
    $region38: #{conv2d_relu.1} parent=5 // pred_check_branch
      %675 = sbr.rel (%p673) target = $region40
    $region39: #{conv2d_relu.1} parent=5 // pred_region
      %s676 = ssub.s32 %s9, 2
      // Predicated region
      $region41: #{conv2d_relu.1} parent=39 // pred_check
        %p677 = pneg %p106
      $region42: #{conv2d_relu.1} parent=39 // pred_check_branch
        %679 = sbr.rel (%p677) target = $region44
      $region43: #{conv2d_relu.1} parent=39 // pred_region
        %s680 = smul.u32 32, %s15
        %p681 = scmp.lt.s32.totalorder %s680, 63
        %s682 = scalar_select %p681, %s680, 63
        %s683 = smul.addr %s682, 8
        %s684 = scalar_lea.vmem %s3, %s683
      $region44: #{conv2d_relu.1} parent=39 // pred_fallthru
        _
    $region40: #{conv2d_relu.1} parent=5 // pred_fallthru
      _
  $region6: #{conv2d_relu.1} parent=0 // loop_footer
    %s13 = sadd.s32 1, %s9
  $region7: #{conv2d_relu.1} parent=0 // loop_footer_branch
    %8 = sbr.rel target = $region3
  $region8: #{conv2d_relu.1} parent=0 // loop_exit
    _

</llo_original>
